<compile_context>
chip_gen: v5e
topology: v5e:2x2
jax: 0.10.0
libtpu: 0.0.40
codegen_flags: <defaults>
</compile_context>

<pallas_src>
import functools

import jax
import jax.numpy as jnp
from jax.experimental import pallas as pl
from jax.experimental.pallas import tpu as pltpu

LANE = 128
SUBLANE = 8


def _round_up(n, m):
    return ((n + m - 1) // m) * m


def mlp_kernel(*refs):
    """refs = (x_ref, w0, b0, w1, b1, ..., w_{L-1}, b_{L-1}, out_ref).

    The whole MLP hot path (matmuls + bias + tanh) runs inside the kernel on
    one batch tile; the layer loop is unrolled at trace time (layers are a
    tiny serial chain -- batch is the only profitable grid axis, so hidden
    activations stay in vregs and never round-trip through HBM).
    """
    x_ref, out_ref = refs[0], refs[-1]
    params = refs[1:-1]
    n_layers = len(params) // 2

    z = x_ref[...]                       # f32 batch tile
    for i in range(n_layers):
        w = params[2 * i][...]
        b = params[2 * i + 1][...]
        z = jnp.dot(z, w, preferred_element_type=jnp.float32) + b
        if i < n_layers - 1:             # last linear has no activation
            z = jnp.tanh(z)
    out_ref[...] = z.astype(out_ref.dtype)


def mlp_forward(x, weights, biases, *, block_b=512):
    """x: (B, d_in); weights[i]: (in_i, out_i); biases[i]: (out_i,).

    Zero-padding of the batch rows, of x's columns / W0's rows, and of the
    last layer's output columns + bias is mathematically exact; the padded
    rows/columns are sliced off before returning.
    """
    B, d_in = x.shape
    d_out = weights[-1].shape[1]

    # Lane-dense I/O: pad input/output feature dims up to a multiple of 128.
    d_in_p = _round_up(max(d_in, 1), LANE)
    d_out_p = _round_up(max(d_out, 1), LANE)

    # Adaptive batch tile: never pad a small batch up to the max tile.
    block_b = min(block_b, _round_up(B, SUBLANE))
    block_b = _round_up(block_b, SUBLANE)
    n_blocks = pl.cdiv(B, block_b)
    B_p = n_blocks * block_b

    def pad2d(a, rows=None, cols=None):
        r = a.shape[0] if rows is None else rows
        c = a.shape[1] if cols is None else cols
        return jnp.pad(a, ((0, r - a.shape[0]), (0, c - a.shape[1])))

    x_p = pad2d(jnp.asarray(x, jnp.float32), rows=B_p, cols=d_in_p)
    ws = [jnp.asarray(w, jnp.float32) for w in weights]
    bs = [jnp.asarray(b, jnp.float32).reshape(1, -1) for b in biases]
    ws[0] = pad2d(ws[0], rows=d_in_p)     # zero rows -> identical matmul result
    ws[-1] = pad2d(ws[-1], cols=d_out_p)  # extra output columns sliced off below
    bs[-1] = pad2d(bs[-1], cols=d_out_p)

    params = []
    in_specs = [pl.BlockSpec((block_b, d_in_p), lambda i: (i, 0))]
    flops = 0
    transcendentals = 0
    for li, (w, b) in enumerate(zip(ws, bs)):
        params += [w, b]
        # Full-array blocks with constant index maps -> parameters are DMA'd
        # once and stay resident in VMEM across the whole batch grid.
        in_specs.append(pl.BlockSpec(w.shape, lambda i: (0, 0)))
        in_specs.append(pl.BlockSpec(b.shape, lambda i: (0, 0)))
        flops += 2 * B_p * w.shape[0] * w.shape[1]
        if li < len(ws) - 1:
            transcendentals += B_p * w.shape[1]

    bytes_accessed = (
        x_p.size * 4
        + sum(p.size * 4 for p in params)
        + B_p * d_out_p * 4
    )

    out_p = pl.pallas_call(
        mlp_kernel,
        out_shape=jax.ShapeDtypeStruct((B_p, d_out_p), jnp.float32),
        grid=(n_blocks,),
        in_specs=in_specs,
        out_specs=pl.BlockSpec((block_b, d_out_p), lambda i: (i, 0)),
        compiler_params=pltpu.CompilerParams(
            dimension_semantics=("parallel",),
        ),
        cost_estimate=pl.CostEstimate(
            flops=flops,
            transcendentals=transcendentals,
            bytes_accessed=bytes_accessed,
        ),
    )(x_p, *params)

    return out_p[:B, :d_out].astype(x.dtype)


def init_mlp_params(key, layers):
    """Deterministic init mimicking nn.Linear default: U(-1/sqrt(fan_in), +)."""
    weights, biases = [], []
    for fan_in, fan_out in zip(layers[:-1], layers[1:]):
        key, kw, kb = jax.random.split(key, 3)
        bound = 1.0 / float(fan_in) ** 0.5
        weights.append(
            jax.random.uniform(kw, (fan_in, fan_out), jnp.float32, -bound, bound)
        )
        biases.append(
            jax.random.uniform(kb, (fan_out,), jnp.float32, -bound, bound)
        )
    return weights, biases
    # TODO(synk): the module also defines `self.output = nn.Linear(layers[-1], 1)`
    # but it is never used in forward(), so it is intentionally not instantiated.


def mlp_ref(x, weights, biases):
    """Pure-JAX reference matching the PyTorch forward exactly."""
    z = x
    for i in range(len(weights) - 1):
        z = jnp.tanh(z @ weights[i] + biases[i])
    return z @ weights[-1] + biases[-1]


if __name__ == "__main__":
    # Timoshenko-beam PINN style MLP: 1 coordinate in -> hidden 32, 32 -> 1 out.
    layers = [1, 32, 32, 1]
    weights, biases = init_mlp_params(jax.random.PRNGKey(0), layers)

    fwd = jax.jit(functools.partial(mlp_forward, block_b=512))

    key = jax.random.PRNGKey(0)
    ok = True
    # Small demo batch + a non-multiple-of-tile batch (exercises padding and
    # a multi-step grid for megacore sharding on v7x).
    for batch in (16, 1100):
        key, kx = jax.random.split(key)
        x = jax.random.uniform(kx, (batch, layers[0]), jnp.float32)

        out = fwd(x, weights, biases)
        out = jax.block_until_ready(out)

        ref = mlp_ref(x, weights, biases)
        assert out.shape == ref.shape == (batch, 1)
        ok &= bool(jnp.allclose(out, ref, rtol=1e-5, atol=1e-5))

    assert ok
    print("KERNEL_OK")
</pallas_src>

<mosaic_0001>
module attributes {stable_mosaic.version = 11 : i64} {
  func.func @mlp_kernel(%arg0: i32, %arg1: memref<16x128xf32, #tpu.memory_space<vmem>>, %arg2: memref<128x32xf32, #tpu.memory_space<vmem>>, %arg3: memref<1x32xf32, #tpu.memory_space<vmem>>, %arg4: memref<32x32xf32, #tpu.memory_space<vmem>>, %arg5: memref<1x32xf32, #tpu.memory_space<vmem>>, %arg6: memref<32x128xf32, #tpu.memory_space<vmem>>, %arg7: memref<1x128xf32, #tpu.memory_space<vmem>>, %arg8: memref<16x128xf32, #tpu.memory_space<vmem>>) attributes {dimension_semantics = [#tpu.dimension_semantics<parallel>], iteration_bounds = array<i64: 1>, scalar_prefetch = 0 : i64, scratch_operands = 0 : i64, tpu.core_type = #tpu.core_type<tc>, window_params = [{transform_indices = @transform_0, window_bounds = array<i64: 16, 128>}, {pipeline_mode = #tpu.pipeline_mode<synchronous>, transform_indices = @transform_1, window_bounds = array<i64: 128, 32>}, {pipeline_mode = #tpu.pipeline_mode<synchronous>, transform_indices = @transform_2, window_bounds = array<i64: 1, 32>}, {pipeline_mode = #tpu.pipeline_mode<synchronous>, transform_indices = @transform_3, window_bounds = array<i64: 32, 32>}, {pipeline_mode = #tpu.pipeline_mode<synchronous>, transform_indices = @transform_4, window_bounds = array<i64: 1, 32>}, {pipeline_mode = #tpu.pipeline_mode<synchronous>, transform_indices = @transform_5, window_bounds = array<i64: 32, 128>}, {pipeline_mode = #tpu.pipeline_mode<synchronous>, transform_indices = @transform_6, window_bounds = array<i64: 1, 128>}, {transform_indices = @transform_7, window_bounds = array<i64: 16, 128>}]} {
    %c0 = arith.constant 0 : index
    %c0_0 = arith.constant 0 : index
    %0 = vector.load %arg1[%c0, %c0_0] : memref<16x128xf32, #tpu.memory_space<vmem>>, vector<16x128xf32>
    %c0_1 = arith.constant 0 : index
    %c0_2 = arith.constant 0 : index
    %1 = vector.load %arg2[%c0_1, %c0_2] : memref<128x32xf32, #tpu.memory_space<vmem>>, vector<128x32xf32>
    %c0_3 = arith.constant 0 : index
    %c0_4 = arith.constant 0 : index
    %2 = vector.load %arg3[%c0_3, %c0_4] : memref<1x32xf32, #tpu.memory_space<vmem>>, vector<1x32xf32>
    %cst = arith.constant dense<0.000000e+00> : vector<16x32xf32>
    %3 = tpu.matmul %0, %1, %cst {dimension_numbers = #tpu.dot_dimension_numbers<[1], [0], [0], [1], [0, 0, 1, 1], [], []>} : vector<16x128xf32>, vector<128x32xf32>, vector<16x32xf32> -> vector<16x32xf32>
    %4 = vector.broadcast %2 : vector<1x32xf32> to vector<16x32xf32>
    %5 = arith.addf %3, %4 : vector<16x32xf32>
    %6 = math.tanh %5 : vector<16x32xf32>
    %c0_5 = arith.constant 0 : index
    %c0_6 = arith.constant 0 : index
    %7 = vector.load %arg4[%c0_5, %c0_6] : memref<32x32xf32, #tpu.memory_space<vmem>>, vector<32x32xf32>
    %c0_7 = arith.constant 0 : index
    %c0_8 = arith.constant 0 : index
    %8 = vector.load %arg5[%c0_7, %c0_8] : memref<1x32xf32, #tpu.memory_space<vmem>>, vector<1x32xf32>
    %cst_9 = arith.constant dense<0.000000e+00> : vector<16x32xf32>
    %9 = tpu.matmul %6, %7, %cst_9 {dimension_numbers = #tpu.dot_dimension_numbers<[1], [0], [0], [1], [0, 0, 1, 1], [], []>} : vector<16x32xf32>, vector<32x32xf32>, vector<16x32xf32> -> vector<16x32xf32>
    %10 = vector.broadcast %8 : vector<1x32xf32> to vector<16x32xf32>
    %11 = arith.addf %9, %10 : vector<16x32xf32>
    %12 = math.tanh %11 : vector<16x32xf32>
    %c0_10 = arith.constant 0 : index
    %c0_11 = arith.constant 0 : index
    %13 = vector.load %arg6[%c0_10, %c0_11] : memref<32x128xf32, #tpu.memory_space<vmem>>, vector<32x128xf32>
    %c0_12 = arith.constant 0 : index
    %c0_13 = arith.constant 0 : index
    %14 = vector.load %arg7[%c0_12, %c0_13] : memref<1x128xf32, #tpu.memory_space<vmem>>, vector<1x128xf32>
    %cst_14 = arith.constant dense<0.000000e+00> : vector<16x128xf32>
    %15 = tpu.matmul %12, %13, %cst_14 {dimension_numbers = #tpu.dot_dimension_numbers<[1], [0], [0], [1], [0, 0, 1, 1], [], []>} : vector<16x32xf32>, vector<32x128xf32>, vector<16x128xf32> -> vector<16x128xf32>
    %16 = vector.broadcast %14 : vector<1x128xf32> to vector<16x128xf32>
    %17 = arith.addf %15, %16 : vector<16x128xf32>
    %c0_15 = arith.constant 0 : index
    %c0_16 = arith.constant 0 : index
    %18 = vector.load %arg8[%c0_15, %c0_16] : memref<16x128xf32, #tpu.memory_space<vmem>>, vector<16x128xf32>
    tpu.vector_store %arg8[%c0_15, %c0_16], %17 {strides = array<i32>} : memref<16x128xf32, #tpu.memory_space<vmem>>, vector<16x128xf32>,
    return
  }
  func.func @transform_0(%arg0: i32) -> (i32, i32) {
    %c0_i32 = arith.constant 0 : i32
    %c0_i32_0 = arith.constant 0 : i32
    return %arg0, %c0_i32 : i32, i32
  }
  func.func @transform_1(%arg0: i32) -> (i32, i32) {
    %c0_i32 = arith.constant 0 : i32
    %c0_i32_0 = arith.constant 0 : i32
    %c0_i32_1 = arith.constant 0 : i32
    return %c0_i32, %c0_i32_0 : i32, i32
  }
  func.func @transform_2(%arg0: i32) -> (i32, i32) {
    %c0_i32 = arith.constant 0 : i32
    %c0_i32_0 = arith.constant 0 : i32
    %c0_i32_1 = arith.constant 0 : i32
    return %c0_i32, %c0_i32_0 : i32, i32
  }
  func.func @transform_3(%arg0: i32) -> (i32, i32) {
    %c0_i32 = arith.constant 0 : i32
    %c0_i32_0 = arith.constant 0 : i32
    %c0_i32_1 = arith.constant 0 : i32
    return %c0_i32, %c0_i32_0 : i32, i32
  }
  func.func @transform_4(%arg0: i32) -> (i32, i32) {
    %c0_i32 = arith.constant 0 : i32
    %c0_i32_0 = arith.constant 0 : i32
    %c0_i32_1 = arith.constant 0 : i32
    return %c0_i32, %c0_i32_0 : i32, i32
  }
  func.func @transform_5(%arg0: i32) -> (i32, i32) {
    %c0_i32 = arith.constant 0 : i32
    %c0_i32_0 = arith.constant 0 : i32
    %c0_i32_1 = arith.constant 0 : i32
    return %c0_i32, %c0_i32_0 : i32, i32
  }
  func.func @transform_6(%arg0: i32) -> (i32, i32) {
    %c0_i32 = arith.constant 0 : i32
    %c0_i32_0 = arith.constant 0 : i32
    %c0_i32_1 = arith.constant 0 : i32
    return %c0_i32, %c0_i32_0 : i32, i32
  }
  func.func @transform_7(%arg0: i32) -> (i32, i32) {
    %c0_i32 = arith.constant 0 : i32
    %c0_i32_0 = arith.constant 0 : i32
    return %arg0, %c0_i32 : i32, i32
  }
}

</mosaic_0001>

<llo_original>
// kernel: mlp_forward.1
$region0: #{mlp_forward.1}
  #allocation0 [shape = 'u32[]', space=smem, size = 0x4, offset = 0x4, fixed_abs, tag = 'smem constant byte address 0x4 - core index']
  #allocation1 [shape = 'u32[72,128]{1,0:T(1,128)}', space=vmem, size = 0x9000, scoped, tag = 'internal scratch']
  %s0 = inlined_call_operand.vmem [shape: f32[16,128], index: 0, kind: input, shape index: {}]
  %s1 = inlined_call_operand.vmem [shape: f32[128,32], index: 1, kind: input, shape index: {}]
  %s2 = inlined_call_operand.vmem [shape: f32[1,32], index: 2, kind: input, shape index: {}]
  %s3 = inlined_call_operand.vmem [shape: f32[32,32], index: 3, kind: input, shape index: {}]
  %s4 = inlined_call_operand.vmem [shape: f32[1,32], index: 4, kind: input, shape index: {}]
  %s5 = inlined_call_operand.vmem [shape: f32[32,128], index: 5, kind: input, shape index: {}]
  %s6 = inlined_call_operand.vmem [shape: f32[1,128], index: 6, kind: input, shape index: {}]
  %s7 = inlined_call_operand.vmem [shape: f32[16,128], index: 7, kind: output, shape index: {}]
  %s8 = sld [smem:[#allocation0]]
  $region38: #{mlp_forward.1} parent=0
    _
  %s10 = ssub.s32 1, %s8
  %s11 = scalar_select 0, %s10, %s8
  // Predicated region
  $region2: #{mlp_forward.1} parent=0 // pred_check
    _
  $region3: #{mlp_forward.1} parent=0 // pred_check_branch
    %13 = sbr.rel (0) target = $region5
  $region4: #{mlp_forward.1} parent=0 // pred_region
    _
  $region5: #{mlp_forward.1} parent=0 // pred_fallthru
    _
  // Predicated region
  $region6: #{mlp_forward.1} parent=0 // pred_check
    _
  $region7: #{mlp_forward.1} parent=0 // pred_check_branch
    %15 = sbr.rel (0) target = $region9
  $region8: #{mlp_forward.1} parent=0 // pred_region
    _
  $region9: #{mlp_forward.1} parent=0 // pred_fallthru
    _
  // Predicated region
  $region10: #{mlp_forward.1} parent=0 // pred_check
    _
  $region11: #{mlp_forward.1} parent=0 // pred_check_branch
    %17 = sbr.rel (0) target = $region13
  $region12: #{mlp_forward.1} parent=0 // pred_region
    _
  $region13: #{mlp_forward.1} parent=0 // pred_fallthru
    _
  // Predicated region
  $region14: #{mlp_forward.1} parent=0 // pred_check
    _
  $region15: #{mlp_forward.1} parent=0 // pred_check_branch
    %19 = sbr.rel (0) target = $region17
  $region16: #{mlp_forward.1} parent=0 // pred_region
    _
  $region17: #{mlp_forward.1} parent=0 // pred_fallthru
    _
  // Predicated region
  $region18: #{mlp_forward.1} parent=0 // pred_check
    _
  $region19: #{mlp_forward.1} parent=0 // pred_check_branch
    %21 = sbr.rel (0) target = $region21
  $region20: #{mlp_forward.1} parent=0 // pred_region
    _
  $region21: #{mlp_forward.1} parent=0 // pred_fallthru
    _
  // Predicated region
  $region22: #{mlp_forward.1} parent=0 // pred_check
    _
  $region23: #{mlp_forward.1} parent=0 // pred_check_branch
    %23 = sbr.rel (0) target = $region25
  $region24: #{mlp_forward.1} parent=0 // pred_region
    _
  $region25: #{mlp_forward.1} parent=0 // pred_fallthru
    _
  // Predicated region
  $region26: #{mlp_forward.1} parent=0 // pred_check
    _
  $region27: #{mlp_forward.1} parent=0 // pred_check_branch
    %25 = sbr.rel (0) target = $region29
  $region28: #{mlp_forward.1} parent=0 // pred_region
    _
  $region29: #{mlp_forward.1} parent=0 // pred_fallthru
    _
  %v26 = vld [vmem:[%s0] sm:$0xff]
  %v27 = vld [vmem:[%s0 + $0x8] sm:$0xff]
  %v28 = vld [vmem:[%s1] sm:$0xff]
  %v29 = vld [vmem:[%s1 + $0x8] sm:$0xff]
  %v30 = vld [vmem:[%s1 + $0x10] sm:$0xff]
  %v31 = vld [vmem:[%s1 + $0x18] sm:$0xff]
  %v32 = vld [vmem:[%s1 + $0x20] sm:$0xff]
  %v33 = vld [vmem:[%s1 + $0x28] sm:$0xff]
  %v34 = vld [vmem:[%s1 + $0x30] sm:$0xff]
  %v35 = vld [vmem:[%s1 + $0x38] sm:$0xff]
  %v36 = vld [vmem:[%s1 + $0x40] sm:$0xff]
  %v37 = vld [vmem:[%s1 + $0x48] sm:$0xff]
  %v38 = vld [vmem:[%s1 + $0x50] sm:$0xff]
  %v39 = vld [vmem:[%s1 + $0x58] sm:$0xff]
  %v40 = vld [vmem:[%s1 + $0x60] sm:$0xff]
  %v41 = vld [vmem:[%s1 + $0x68] sm:$0xff]
  %v42 = vld [vmem:[%s1 + $0x70] sm:$0xff]
  %v43 = vld [vmem:[%s1 + $0x78] sm:$0xff]
  %v44 = vld [vmem:[%s2] sm:$0x1]
  %v46 = vperm.slane %v44, 0
  %48 = vmatpush.msra.mxu0 %v43
  %49 = vmatpush.msra.mxu0 %v42
  %50 = vmatpush.msra.mxu0 %v41
  %51 = vmatpush.msra.mxu0 %v40
  %52 = vmatpush.msra.mxu0 %v39
  %53 = vmatpush.msra.mxu0 %v38
  %54 = vmatpush.msra.mxu0 %v37
  %55 = vmatpush.msra.mxu0 %v36
  %56 = vmatpush.msra.mxu0 %v35
  %57 = vmatpush.msra.mxu0 %v34
  %58 = vmatpush.msra.mxu0 %v33
  %59 = vmatpush.msra.mxu0 %v32
  %60 = vmatpush.msra.mxu0 %v31
  %61 = vmatpush.msra.mxu0 %v30
  %62 = vmatpush.msra.mxu0 %v29
  %63 = vmatpush.msra.mxu0 %v28
  %64 = vmatmul.f32.gmra.mxu0 %v26
  %v65 = vpop.f32.mrf.mxu0
  %v66 = vadd.f32 %v46, %v65
  %67 = vmatmul.f32.gmra.mxu0 %v27
  %v68 = vpop.f32.mrf.mxu0
  %v69 = vadd.f32 %v46, %v68
  %70 = vdwg.mxu0
  %v71 = vtanh.pop %v66
  %v72 = vtanh.pop %v69
  %v73 = vld [vmem:[%s3] sm:$0xff]
  %v74 = vld [vmem:[%s3 + $0x8] sm:$0xff]
  %v75 = vld [vmem:[%s3 + $0x10] sm:$0xff]
  %v76 = vld [vmem:[%s3 + $0x18] sm:$0xff]
  %v77 = vld [vmem:[%s4] sm:$0x1]
  %v79 = vperm.slane %v77, 0
  %vm81 = vcmask 261120
  %v83 = vsel %vm81, %v71, 0
  %v86 = vsel %vm81, %v72, 0
  %88 = vmatpush.msra.mxu0 0.0
  %89 = vmatpush.msra.mxu0 0.0
  %90 = vmatpush.msra.mxu0 0.0
  %91 = vmatpush.msra.mxu0 0.0
  %92 = vmatpush.msra.mxu0 0.0
  %93 = vmatpush.msra.mxu0 0.0
  %94 = vmatpush.msra.mxu0 0.0
  %95 = vmatpush.msra.mxu0 0.0
  %96 = vmatpush.msra.mxu0 0.0
  %97 = vmatpush.msra.mxu0 0.0
  %98 = vmatpush.msra.mxu0 0.0
  %99 = vmatpush.msra.mxu0 0.0
  %100 = vmatpush.msra.mxu0 %v76
  %101 = vmatpush.msra.mxu0 %v75
  %102 = vmatpush.msra.mxu0 %v74
  %103 = vmatpush.msra.mxu0 %v73
  %104 = vmatmul.f32.gmra.mxu0 %v83
  %v105 = vpop.f32.mrf.mxu0
  %v106 = vadd.f32 %v79, %v105
  %107 = vmatmul.f32.gmra.mxu0 %v86
  %v108 = vpop.f32.mrf.mxu0
  %v109 = vadd.f32 %v79, %v108
  %110 = vdwg.mxu0
  %v111 = vtanh.pop %v106
  %v112 = vtanh.pop %v109
  %v113 = vld [vmem:[%s5] sm:$0xff]
  %v114 = vld [vmem:[%s5 + $0x8] sm:$0xff]
  %v115 = vld [vmem:[%s5 + $0x10] sm:$0xff]
  %v116 = vld [vmem:[%s5 + $0x18] sm:$0xff]
  %v117 = vld [vmem:[%s6] sm:$0x1]
  %v119 = vperm.slane %v117, 0
  %v122 = vsel %vm81, %v111, 0
  %v125 = vsel %vm81, %v112, 0
  %127 = vmatpush.msra.mxu0 0.0
  %128 = vmatpush.msra.mxu0 0.0
  %129 = vmatpush.msra.mxu0 0.0
  %130 = vmatpush.msra.mxu0 0.0
  %131 = vmatpush.msra.mxu0 0.0
  %132 = vmatpush.msra.mxu0 0.0
  %133 = vmatpush.msra.mxu0 0.0
  %134 = vmatpush.msra.mxu0 0.0
  %135 = vmatpush.msra.mxu0 0.0
  %136 = vmatpush.msra.mxu0 0.0
  %137 = vmatpush.msra.mxu0 0.0
  %138 = vmatpush.msra.mxu0 0.0
  %139 = vmatpush.msra.mxu0 %v116
  %140 = vmatpush.msra.mxu0 %v115
  %141 = vmatpush.msra.mxu0 %v114
  %142 = vmatpush.msra.mxu0 %v113
  %143 = vmatmul.f32.gmra.mxu0 %v122
  %v144 = vpop.f32.mrf.mxu0
  %v145 = vadd.f32 %v119, %v144
  %146 = vmatmul.f32.gmra.mxu0 %v125
  %v147 = vpop.f32.mrf.mxu0
  %v148 = vadd.f32 %v119, %v147
  %149 = vdwg.mxu0
  %150 = vst [vmem:[%s7] sm:$0xff] %v145
  %151 = vst [vmem:[%s7 + $0x8] sm:$0xff] %v148
  // Predicated region
  $region30: #{mlp_forward.1} parent=0 // pred_check
    _
  $region31: #{mlp_forward.1} parent=0 // pred_check_branch
    %153 = sbr.rel (0) target = $region33
  $region32: #{mlp_forward.1} parent=0 // pred_region
    _
  $region33: #{mlp_forward.1} parent=0 // pred_fallthru
    _
  // Predicated region
  $region34: #{mlp_forward.1} parent=0 // pred_check
    _
  $region35: #{mlp_forward.1} parent=0 // pred_check_branch
    %155 = sbr.rel (0) target = $region37
  $region36: #{mlp_forward.1} parent=0 // pred_region
    _
  $region37: #{mlp_forward.1} parent=0 // pred_fallthru
    _

</llo_original>
